<compile_context>
chip_gen: v7x
topology: tpu7x:2x2x1
jax: 0.10.0
libtpu: 0.0.40
codegen_flags: <defaults>
</compile_context>

<pallas_src>
import functools
import math

import numpy as np
import jax
import jax.numpy as jnp
from jax.experimental import pallas as pl
from jax.experimental.pallas import tpu as pltpu

BN_EPS = 1e-5
_VMEM_CAP = 48 * 1024 * 1024          # stay well under v7x's 64 MiB physical VMEM


# ----------------------------- small helpers ------------------------------

def _round_up(x, m):
    return (x + m - 1) // m * m


def _pad_c(c):
    """Pad a trunk channel count up to a multiple of 128 (lane-dense outputs)."""
    return _round_up(c, 128)


def _row_tiling(m, cap=512):
    """Pick (row_tile, padded_rows).  Guarantees tile | padded_rows, tile % 8 == 0 (or full),
    and >= 2 grid steps whenever feasible (keeps both v7x TensorCores busy)."""
    if m <= 16:
        t = _round_up(max(m, 1), 8)
        return t, t
    tm = min(cap, _round_up((m + 1) // 2, 16))
    return tm, _round_up(m, tm)


def _spatial_tile(hw, cap=512):
    if hw <= cap:
        return hw
    for t in (512, 256, 128, 64, 32, 16, 8):
        if hw % t == 0:
            return t
    return hw


def _cparams(grid_rank, vmem_need_bytes):
    """All grid axes are data-parallel; scoped VMEM = 2x (double buffering) + slack, <= 48 MiB."""
    limit = int(min(max(2 * vmem_need_bytes + (4 << 20), 8 << 20), _VMEM_CAP))
    return pltpu.CompilerParams(
        dimension_semantics=("parallel",) * grid_rank,
        vmem_limit_bytes=limit,
    )


# ----------------------------- Pallas kernels ------------------------------

def _matmul_affine_act_kernel(a_ref, w_ref, s_ref, b_ref, o_ref, *, act):
    acc = jnp.dot(a_ref[...], w_ref[...], preferred_element_type=jnp.float32)
    y = acc * s_ref[...] + b_ref[...]
    if act == "relu":
        y = jnp.maximum(y, 0.0)
    o_ref[...] = y.astype(o_ref.dtype)


def matmul_affine_act(a, w, scale, bias, act="none", out_dtype=jnp.bfloat16):
    """act((a @ w) * scale + bias); scale/bias are per output column (folded BN)."""
    m, k = a.shape
    n = w.shape[1]
    tm, mp = _row_tiling(m)
    a = a.astype(jnp.bfloat16)
    if mp != m:
        a = jnp.pad(a, ((0, mp - m), (0, 0)))
    need = 2 * (tm * k + k * n + tm * n) + 8 * n
    out = pl.pallas_call(
        functools.partial(_matmul_affine_act_kernel, act=act),
        out_shape=jax.ShapeDtypeStruct((mp, n), out_dtype),
        grid_spec=pltpu.PrefetchScalarGridSpec(
            num_scalar_prefetch=0,
            grid=(mp // tm,),
            in_specs=[
                pl.BlockSpec((tm, k), lambda i: (i, 0)),
                pl.BlockSpec((k, n), lambda i: (0, 0)),
                pl.BlockSpec((1, n), lambda i: (0, 0)),
                pl.BlockSpec((1, n), lambda i: (0, 0)),
            ],
            out_specs=pl.BlockSpec((tm, n), lambda i: (i, 0)),
        ),
        compiler_params=_cparams(1, need),
    )(a, w, scale.reshape(1, n), bias.reshape(1, n))
    return out[:m] if mp != m else out


def _grouped_mm_kernel(a_ref, w_ref, s_ref, b_ref, o_ref):
    acc = jnp.dot(a_ref[0], w_ref[0], preferred_element_type=jnp.float32)
    y = jnp.maximum(acc * s_ref[0] + b_ref[0], 0.0)
    o_ref[0] = y.astype(o_ref.dtype)


def grouped_conv3x3_bn_relu(x, p, stride):
    """Grouped 3x3 conv (pad=1) + folded BN + ReLU.
    One (tm, 9*gw) x (9*gw, gw) matmul tile per group -- no dense block-diagonal expansion."""
    n, h, w_sz, c = x.shape
    gw = p["w"].shape[2]
    g = c // gw
    ho = (h + 2 - 3) // stride + 1
    wo = (w_sz + 2 - 3) // stride + 1
    m = n * ho * wo

    # TODO(synk): im2col is still materialized via XLA pad/stack/transpose (9x activation HBM
    # traffic); an in-kernel halo-DMA gather would remove it.
    xp = jnp.pad(x, ((0, 0), (1, 1), (1, 1), (0, 0)))
    taps = []
    for ki in range(3):
        for kj in range(3):
            taps.append(xp[:, ki:ki + stride * (ho - 1) + 1:stride,
                           kj:kj + stride * (wo - 1) + 1:stride, :])
    cols = jnp.stack(taps, axis=0).reshape(9, m, g, gw)                 # (tap, m, group, j)
    cols = jnp.transpose(cols, (2, 1, 0, 3)).reshape(g, m, 9 * gw).astype(jnp.bfloat16)

    tm, mp = _row_tiling(m, cap=256)
    if mp != m:
        cols = jnp.pad(cols, ((0, 0), (0, mp - m), (0, 0)))

    kg = 9 * gw
    need = 2 * (tm * kg + kg * gw + tm * gw) + 8 * gw
    out = pl.pallas_call(
        _grouped_mm_kernel,
        out_shape=jax.ShapeDtypeStruct((g, mp, gw), jnp.bfloat16),
        grid_spec=pltpu.PrefetchScalarGridSpec(
            num_scalar_prefetch=0,
            grid=(g, mp // tm),
            in_specs=[
                pl.BlockSpec((1, tm, kg), lambda gi, i: (gi, i, 0)),
                pl.BlockSpec((1, kg, gw), lambda gi, i: (gi, 0, 0)),
                pl.BlockSpec((1, 1, gw), lambda gi, i: (gi, 0, 0)),
                pl.BlockSpec((1, 1, gw), lambda gi, i: (gi, 0, 0)),
            ],
            out_specs=pl.BlockSpec((1, tm, gw), lambda gi, i: (gi, i, 0)),
        ),
        compiler_params=_cparams(2, need),
    )(cols, p["w"], p["scale"].reshape(g, 1, gw), p["bias"].reshape(g, 1, gw))
    out = jnp.transpose(out, (1, 0, 2)).reshape(mp, c)[:m]
    return out.reshape(n, ho, wo, c)


def _se_branch_kernel(h_ref, w1_ref, b1_ref, w2_ref, b2_ref, o_ref):
    pooled = jnp.mean(h_ref[0].astype(jnp.float32), axis=0, keepdims=True)   # (1, Cb)
    z = jnp.dot(pooled.astype(jnp.bfloat16), w1_ref[...],
                preferred_element_type=jnp.float32) + b1_ref[...]
    z = jnp.maximum(z, 0.0).astype(jnp.bfloat16)
    t = jnp.dot(z, w2_ref[...], preferred_element_type=jnp.float32) + b2_ref[...]
    o_ref[0] = jax.nn.sigmoid(t)


def se_branch(h3, sp):
    """Fused Squeeze-Excitation gate: sigmoid(fc2(relu(fc1(avgpool(h))))) -> (N, 1, C)."""
    n, hw, cb = h3.shape
    cse = sp["w1"].shape[1]
    need = 2 * (hw * cb + cb * cse + cse * cb) + 8 * (cse + 2 * cb)
    return pl.pallas_call(
        _se_branch_kernel,
        out_shape=jax.ShapeDtypeStruct((n, 1, cb), jnp.float32),
        grid_spec=pltpu.PrefetchScalarGridSpec(
            num_scalar_prefetch=0,
            grid=(n,),
            in_specs=[
                pl.BlockSpec((1, hw, cb), lambda i: (i, 0, 0)),
                pl.BlockSpec((cb, cse), lambda i: (0, 0)),
                pl.BlockSpec((1, cse), lambda i: (0, 0)),
                pl.BlockSpec((cse, cb), lambda i: (0, 0)),
                pl.BlockSpec((1, cb), lambda i: (0, 0)),
            ],
            out_specs=pl.BlockSpec((1, 1, cb), lambda i: (i, 0, 0)),
        ),
        compiler_params=_cparams(1, need),
    )(h3, sp["w1"], sp["b1"], sp["w2"], sp["b2"])


def _conv_c_fused_kernel(h_ref, s_ref, w_ref, sc_ref, b_ref, res_ref, o_ref):
    x = (h_ref[0].astype(jnp.float32) * s_ref[0]).astype(jnp.bfloat16)   # SE channel gate
    acc = jnp.dot(x, w_ref[...], preferred_element_type=jnp.float32)
    y = acc * sc_ref[...] + b_ref[...] + res_ref[0].astype(jnp.float32)  # folded BN + residual
    o_ref[0] = jnp.maximum(y, 0.0).astype(o_ref.dtype)


def conv_c_se_residual(h3, s, shortcut3, cp):
    """relu( (h * se_gate) @ w_c * bn_scale + bn_bias + shortcut ) -- one kernel per block tail."""
    n, hw, cb = h3.shape
    cout = cp["w"].shape[1]
    ts = _spatial_tile(hw)
    need = 2 * (ts * cb + cb * cout + 2 * ts * cout) + 4 * (cb + 2 * cout)
    return pl.pallas_call(
        _conv_c_fused_kernel,
        out_shape=jax.ShapeDtypeStruct((n, hw, cout), jnp.bfloat16),
        grid_spec=pltpu.PrefetchScalarGridSpec(
            num_scalar_prefetch=0,
            grid=(n, hw // ts),
            in_specs=[
                pl.BlockSpec((1, ts, cb), lambda i, j: (i, j, 0)),
                pl.BlockSpec((1, 1, cb), lambda i, j: (i, 0, 0)),
                pl.BlockSpec((cb, cout), lambda i, j: (0, 0)),
                pl.BlockSpec((1, cout), lambda i, j: (0, 0)),
                pl.BlockSpec((1, cout), lambda i, j: (0, 0)),
                pl.BlockSpec((1, ts, cout), lambda i, j: (i, j, 0)),
            ],
            out_specs=pl.BlockSpec((1, ts, cout), lambda i, j: (i, j, 0)),
        ),
        compiler_params=_cparams(2, need),
    )(h3, s, cp["w"], cp["scale"].reshape(1, cout), cp["bias"].reshape(1, cout), shortcut3)


def _pool_fc_kernel(x_ref, w_ref, b_ref, o_ref):
    pooled = jnp.mean(x_ref[0].astype(jnp.float32), axis=0, keepdims=True)
    o_ref[0] = jnp.dot(pooled.astype(jnp.bfloat16), w_ref[...],
                       preferred_element_type=jnp.float32) + b_ref[...]


def pool_fc(x_nhwc, fp):
    """AdaptiveAvgPool2d((1,1)) + flatten + Linear, fused into one kernel."""
    n, h, w_sz, c = x_nhwc.shape
    x = x_nhwc.reshape(n, h * w_sz, c)
    ncls = fp["w"].shape[1]
    need = 2 * (h * w_sz * c + c * ncls) + 8 * ncls
    out = pl.pallas_call(
        _pool_fc_kernel,
        out_shape=jax.ShapeDtypeStruct((n, 1, ncls), jnp.float32),
        grid_spec=pltpu.PrefetchScalarGridSpec(
            num_scalar_prefetch=0,
            grid=(n,),
            in_specs=[
                pl.BlockSpec((1, h * w_sz, c), lambda i: (i, 0, 0)),
                pl.BlockSpec((c, ncls), lambda i: (0, 0)),
                pl.BlockSpec((1, ncls), lambda i: (0, 0)),
            ],
            out_specs=pl.BlockSpec((1, 1, ncls), lambda i: (i, 0, 0)),
        ),
        compiler_params=_cparams(1, need),
    )(x, fp["w"], fp["b"])
    return out.reshape(n, ncls)


# ----------------------------- glue (im2col, config, params) ------------------------------

def _im2col_dense(x, k, stride, pad):
    """Dense im2col (used only for the tiny stem conv, K = 3*3*3 = 27)."""
    n, h, w_sz, c = x.shape
    ho = (h + 2 * pad - k) // stride + 1
    wo = (w_sz + 2 * pad - k) // stride + 1
    xp = jnp.pad(x, ((0, 0), (pad, pad), (pad, pad), (0, 0)))
    cols = []
    for i in range(k):
        for j in range(k):
            cols.append(xp[:, i:i + stride * (ho - 1) + 1:stride,
                           j:j + stride * (wo - 1) + 1:stride, :])
    cols = jnp.concatenate(cols, axis=-1)
    return cols.reshape(n * ho * wo, k * k * c), (n, ho, wo)


class _KeyGen:
    def __init__(self, key):
        self._key = key
        self._n = 0

    def __call__(self):
        self._n += 1
        return jax.random.fold_in(self._key, self._n)


def _make_divisible(v, divisor, min_value=None):
    if min_value is None:
        min_value = divisor
    new_v = max(min_value, int(v + divisor / 2) // divisor * divisor)
    if new_v < 0.9 * v:
        new_v += divisor
    return new_v


def regnet_stage_config(depth=16, w_0=48, w_a=27.89, w_m=2.09,
                        group_width=8, bottleneck_multiplier=1.0, se_ratio=0.25):
    """Mirrors BlockParams.from_init_params."""
    QUANT, STRIDE = 8, 2
    widths_cont = np.arange(depth) * w_a + w_0
    block_capacity = np.round(np.log(widths_cont / w_0) / math.log(w_m))
    block_widths = (np.round(w_0 * np.power(w_m, block_capacity) / QUANT) * QUANT).astype(int).tolist()
    num_stages = len(set(block_widths))
    split_helper = zip(block_widths + [0], [0] + block_widths,
                       block_widths + [0], [0] + block_widths)
    splits = [w != wp or r != rp for w, wp, r, rp in split_helper]
    stage_widths = [w for w, t in zip(block_widths, splits[:-1]) if t]
    stage_depths = np.diff([d for d, t in enumerate(splits) if t]).astype(int).tolist()
    strides = [STRIDE] * num_stages
    bms = [bottleneck_multiplier] * num_stages
    gws = [group_width] * num_stages
    widths = [int(w * b) for w, b in zip(stage_widths, bms)]
    gw_min = [min(g, w_bot) for g, w_bot in zip(gws, widths)]
    ws_bot = [_make_divisible(w_bot, g) for w_bot, g in zip(widths, gw_min)]
    stage_widths = [int(w_bot / b) for w_bot, b in zip(ws_bot, bms)]
    return stage_widths, stage_depths, gw_min, bms, strides, se_ratio


def _conv_params(kg, cin_real, cout_real, k, cin_pad=None, cout_pad=None):
    """Dense conv weight as (k*k*cin_pad, cout_pad) bf16 matrix + folded-BN scale/bias (f32)."""
    cin_pad = cin_real if cin_pad is None else cin_pad
    cout_pad = cout_real if cout_pad is None else cout_pad
    std = math.sqrt(2.0 / (k * k * cout_real))            # nn.init.normal_(std=sqrt(2/fan_out))
    w = np.asarray(jax.random.normal(kg(), (cout_real, cin_real, k, k), jnp.float32)) * std
    w_t = np.transpose(w, (2, 3, 1, 0))                   # (kh, kw, cin, cout) matches im2col order
    w_full = np.zeros((k, k, cin_pad, cout_pad), np.float32)
    w_full[:, :, :cin_real, :cout_real] = w_t
    scale = np.ones((cout_pad,), np.float32)
    scale[:cout_real] = 1.0 / math.sqrt(1.0 + BN_EPS)     # folded inference BN (init stats)
    bias = np.zeros((cout_pad,), np.float32)
    return {"w": jnp.asarray(w_full.reshape(k * k * cin_pad, cout_pad), jnp.bfloat16),
            "scale": jnp.asarray(scale, jnp.float32),
            "bias": jnp.asarray(bias, jnp.float32)}


def _grouped_conv_params(kg, c_real, c_pad, gw, k=3):
    """Grouped 3x3 conv weight as (G_pad, 9*gw, gw) bf16 + folded-BN scale/bias per channel."""
    std = math.sqrt(2.0 / (k * k * c_real))
    w = np.asarray(jax.random.normal(kg(), (c_real, gw, k, k), jnp.float32)) * std
    g_real, g_pad = c_real // gw, c_pad // gw
    w = w.reshape(g_real, gw, gw, k, k)                   # (g, o, j, ki, kj)
    w = np.transpose(w, (0, 3, 4, 2, 1))                  # (g, ki, kj, j, o) -> K order = tap*gw + j
    w = w.reshape(g_real, k * k * gw, gw)
    w_full = np.zeros((g_pad, k * k * gw, gw), np.float32)
    w_full[:g_real] = w
    scale = np.ones((c_pad,), np.float32)
    scale[:c_real] = 1.0 / math.sqrt(1.0 + BN_EPS)
    bias = np.zeros((c_pad,), np.float32)
    return {"w": jnp.asarray(w_full, jnp.bfloat16),
            "scale": jnp.asarray(scale, jnp.float32),
            "bias": jnp.asarray(bias, jnp.float32)}


def _se_params(kg, c_real, c_pad, c_se):
    """SE fc1/fc2 (1x1 convs with bias); biases initialized to zero (deterministic)."""
    std1 = math.sqrt(2.0 / c_se)
    w1 = np.asarray(jax.random.normal(kg(), (c_se, c_real), jnp.float32)) * std1
    std2 = math.sqrt(2.0 / c_real)
    w2 = np.asarray(jax.random.normal(kg(), (c_real, c_se), jnp.float32)) * std2
    w1_full = np.zeros((c_pad, c_se), np.float32)
    w1_full[:c_real] = w1.T
    w2_full = np.zeros((c_se, c_pad), np.float32)
    w2_full[:, :c_real] = w2.T
    return {"w1": jnp.asarray(w1_full, jnp.bfloat16),
            "b1": jnp.zeros((1, c_se), jnp.float32),
            "w2": jnp.asarray(w2_full, jnp.bfloat16),
            "b2": jnp.zeros((1, c_pad), jnp.float32)}


def _block_params(kg, win_real, win_pad, wout_real, wout_pad, stride, group_width, bm, se_ratio):
    w_b = int(round(wout_real * bm))
    w_b_pad = _pad_c(w_b)
    p = {"stride": stride}
    if win_real != wout_real or stride != 1:
        p["proj"] = _conv_params(kg, win_real, wout_real, 1, cin_pad=win_pad, cout_pad=wout_pad)
    p["a"] = _conv_params(kg, win_real, w_b, 1, cin_pad=win_pad, cout_pad=w_b_pad)
    p["b"] = _grouped_conv_params(kg, w_b, w_b_pad, group_width)
    w_se = int(round(se_ratio * win_real))
    p["se"] = _se_params(kg, w_b, w_b_pad, w_se)
    p["c"] = _conv_params(kg, w_b, wout_real, 1, cin_pad=w_b_pad, cout_pad=wout_pad)
    return p


def build_regnet_params(key, in_channels, num_classes, stem_width=32):
    kg = _KeyGen(key)
    widths, depths, gws, bms, strides, se_ratio = regnet_stage_config()
    stem_pad = _pad_c(stem_width)
    params = {"stem": _conv_params(kg, in_channels, stem_width, 3, cout_pad=stem_pad)}
    blocks = []
    cur_real, cur_pad = stem_width, stem_pad
    for wout, stride, depth, gw, bm in zip(widths, strides, depths, gws, bms):
        wout_pad = _pad_c(wout)
        for i in range(depth):
            win_real, win_pad = (cur_real, cur_pad) if i == 0 else (wout, wout_pad)
            blocks.append(_block_params(kg, win_real, win_pad, wout, wout_pad,
                                        stride if i == 0 else 1, gw, bm, se_ratio))
        cur_real, cur_pad = wout, wout_pad
    params["blocks"] = blocks
    w_fc = np.asarray(jax.random.normal(kg(), (num_classes, cur_real), jnp.float32)) * 0.01
    w_full = np.zeros((cur_pad, num_classes), np.float32)
    w_full[:cur_real] = w_fc.T
    params["fc"] = {"w": jnp.asarray(w_full, jnp.bfloat16),
                    "b": jnp.zeros((1, num_classes), jnp.float32)}
    return params


# ----------------------------- forward ------------------------------

def block_forward(x, p):
    """ResBottleneckBlock: relu( shortcut + c(SE(b(a(x)))) )."""
    stride = p["stride"]
    n, h, w_sz, cin = x.shape
    if "proj" in p:
        xs = x[:, ::stride, ::stride, :] if stride > 1 else x
        ns, hs, ws, _ = xs.shape
        shortcut = matmul_affine_act(xs.reshape(ns * hs * ws, cin), p["proj"]["w"],
                                     p["proj"]["scale"], p["proj"]["bias"], act="none")
        shortcut = shortcut.reshape(ns, hs, ws, -1)
    else:
        shortcut = x
    h1 = matmul_affine_act(x.reshape(n * h * w_sz, cin), p["a"]["w"],
                           p["a"]["scale"], p["a"]["bias"], act="relu")
    h1 = h1.reshape(n, h, w_sz, -1)
    h2 = grouped_conv3x3_bn_relu(h1, p["b"], stride)                    # (N, Ho, Wo, w_b_pad)
    nb, ho, wo, cb = h2.shape
    h3 = h2.reshape(nb, ho * wo, cb)
    s = se_branch(h3, p["se"])                                          # (N, 1, w_b_pad) gate
    out = conv_c_se_residual(h3, s, shortcut.reshape(nb, ho * wo, -1), p["c"])
    return out.reshape(nb, ho, wo, -1)


def net_forward(params, x_nchw):
    x = jnp.transpose(x_nchw, (0, 2, 3, 1)).astype(jnp.bfloat16)        # NCHW -> NHWC, bf16
    cols, (n, ho, wo) = _im2col_dense(x, 3, 2, 1)                       # SimpleStemIN (3x3 s2)
    sp = params["stem"]
    x = matmul_affine_act(cols, sp["w"], sp["scale"], sp["bias"], act="relu").reshape(n, ho, wo, -1)
    for blk in params["blocks"]:                                        # trunk_output
        x = block_forward(x, blk)
    return pool_fc(x, params["fc"])                                     # avgpool + flatten + fc


if __name__ == "__main__":
    key = jax.random.PRNGKey(0)
    pkey, xkey = jax.random.split(key)

    in_shape = (2, 3, 32, 32)   # (N, C, H, W) -- small, but deep enough for 5 stride-2 stages
    num_classes = 10

    params = build_regnet_params(pkey, in_channels=in_shape[1], num_classes=num_classes)
    x = jax.random.normal(xkey, in_shape, jnp.float32)

    logits = net_forward(params, x)
    logits = jax.block_until_ready(logits)

    assert logits.shape == (in_shape[0], num_classes), logits.shape
    assert bool(jnp.all(jnp.isfinite(logits)))
    print("KERNEL_OK")
</pallas_src>

<mosaic_0001>
module attributes {stable_mosaic.version = 11 : i64} {
  func.func @_matmul_affine_act_kernel(%arg0: i32, %arg1: memref<256x27xbf16, #tpu.memory_space<vmem>>, %arg2: memref<27x128xbf16, #tpu.memory_space<vmem>>, %arg3: memref<1x128xf32, #tpu.memory_space<vmem>>, %arg4: memref<1x128xf32, #tpu.memory_space<vmem>>, %arg5: memref<256x128xbf16, #tpu.memory_space<vmem>>) attributes {dimension_semantics = [#tpu.dimension_semantics<parallel>], iteration_bounds = array<i64: 2>, scalar_prefetch = 0 : i64, scratch_operands = 0 : i64, tpu.core_type = #tpu.core_type<tc>, window_params = [{transform_indices = @transform_0, window_bounds = array<i64: 256, 27>}, {pipeline_mode = #tpu.pipeline_mode<synchronous>, transform_indices = @transform_1, window_bounds = array<i64: 27, 128>}, {pipeline_mode = #tpu.pipeline_mode<synchronous>, transform_indices = @transform_2, window_bounds = array<i64: 1, 128>}, {pipeline_mode = #tpu.pipeline_mode<synchronous>, transform_indices = @transform_3, window_bounds = array<i64: 1, 128>}, {transform_indices = @transform_4, window_bounds = array<i64: 256, 128>}]} {
    %c0 = arith.constant 0 : index
    %c0_0 = arith.constant 0 : index
    %0 = vector.load %arg1[%c0, %c0_0] : memref<256x27xbf16, #tpu.memory_space<vmem>>, vector<256x27xbf16>
    %c0_1 = arith.constant 0 : index
    %c0_2 = arith.constant 0 : index
    %1 = vector.load %arg2[%c0_1, %c0_2] : memref<27x128xbf16, #tpu.memory_space<vmem>>, vector<27x128xbf16>
    %cst = arith.constant dense<0.000000e+00> : vector<256x128xf32>
    %2 = tpu.matmul %0, %1, %cst {dimension_numbers = #tpu.dot_dimension_numbers<[1], [0], [0], [1], [0, 0, 1, 1], [], []>} : vector<256x27xbf16>, vector<27x128xbf16>, vector<256x128xf32> -> vector<256x128xf32>
    %c0_3 = arith.constant 0 : index
    %c0_4 = arith.constant 0 : index
    %3 = vector.load %arg3[%c0_3, %c0_4] : memref<1x128xf32, #tpu.memory_space<vmem>>, vector<1x128xf32>
    %4 = vector.broadcast %3 : vector<1x128xf32> to vector<256x128xf32>
    %5 = arith.mulf %2, %4 : vector<256x128xf32>
    %c0_5 = arith.constant 0 : index
    %c0_6 = arith.constant 0 : index
    %6 = vector.load %arg4[%c0_5, %c0_6] : memref<1x128xf32, #tpu.memory_space<vmem>>, vector<1x128xf32>
    %7 = vector.broadcast %6 : vector<1x128xf32> to vector<256x128xf32>
    %8 = arith.addf %5, %7 : vector<256x128xf32>
    %cst_7 = arith.constant 0.000000e+00 : f32
    %9 = vector.broadcast %cst_7 : f32 to vector<256x128xf32>
    %10 = arith.maximumf %8, %9 : vector<256x128xf32>
    %11 = arith.truncf %10 : vector<256x128xf32> to vector<256x128xbf16>
    %c0_8 = arith.constant 0 : index
    %c0_9 = arith.constant 0 : index
    %12 = vector.load %arg5[%c0_8, %c0_9] : memref<256x128xbf16, #tpu.memory_space<vmem>>, vector<256x128xbf16>
    tpu.vector_store %arg5[%c0_8, %c0_9], %11 {strides = array<i32>} : memref<256x128xbf16, #tpu.memory_space<vmem>>, vector<256x128xbf16>,
    return
  }
  func.func @transform_0(%arg0: i32) -> (i32, i32) {
    %c0_i32 = arith.constant 0 : i32
    %c0_i32_0 = arith.constant 0 : i32
    return %arg0, %c0_i32 : i32, i32
  }
  func.func @transform_1(%arg0: i32) -> (i32, i32) {
    %c0_i32 = arith.constant 0 : i32
    %c0_i32_0 = arith.constant 0 : i32
    %c0_i32_1 = arith.constant 0 : i32
    return %c0_i32, %c0_i32_0 : i32, i32
  }
  func.func @transform_2(%arg0: i32) -> (i32, i32) {
    %c0_i32 = arith.constant 0 : i32
    %c0_i32_0 = arith.constant 0 : i32
    %c0_i32_1 = arith.constant 0 : i32
    return %c0_i32, %c0_i32_0 : i32, i32
  }
  func.func @transform_3(%arg0: i32) -> (i32, i32) {
    %c0_i32 = arith.constant 0 : i32
    %c0_i32_0 = arith.constant 0 : i32
    %c0_i32_1 = arith.constant 0 : i32
    return %c0_i32, %c0_i32_0 : i32, i32
  }
  func.func @transform_4(%arg0: i32) -> (i32, i32) {
    %c0_i32 = arith.constant 0 : i32
    %c0_i32_0 = arith.constant 0 : i32
    return %arg0, %c0_i32 : i32, i32
  }
}

</mosaic_0001>

<llo_original>
// kernel: tpu_custom_call.1
$region0: #{tpu_custom_call.1}
  #allocation0 [shape = 'u32[]', space=smem, size = 0x4, offset = 0x4, fixed_abs, tag = 'smem constant byte address 0x4 - core index']
  #allocation1 [shape = 'u32[144,128]{1,0:T(1,128)}', space=vmem, size = 0x12000, scoped, tag = 'internal scratch']
  %s0 = inlined_call_operand.vmem [shape: bf16[512,27], index: 0, kind: input, shape index: {}]
  %s1 = inlined_call_operand.vmem [shape: bf16[27,128], index: 1, kind: input, shape index: {}]
  %s2 = inlined_call_operand.vmem [shape: f32[1,128], index: 2, kind: input, shape index: {}]
  %s3 = inlined_call_operand.vmem [shape: f32[1,128], index: 3, kind: input, shape index: {}]
  %s4 = inlined_call_operand.hbm [shape: bf16[512,128], index: 4, kind: output, shape index: {}]
  %s5 = sld [smem:[#allocation0]]
  $region49: #{tpu_custom_call.1} parent=0
    _
  %s7 = ssub.s32 1, %s5
  %s8 = scalar_select 0, %s7, %s5
  $region1: #{tpu_custom_call.1} parent=0
    #allocation2 [shape = 'u8[131072]{0}', space=vmem, size = 0x20000, scoped, tag = 'output window, operand 0']
    #allocation3 [shape = 's32[2]{0}', space=sflag, size = 0x8, scoped, tag = 'scoped memory for tpu_custom_call.1']
    %9 = vsyncpa [#allocation3], 0
    %s10 = scalar_lea.sflag [#allocation3], 1
    %11 = vsyncpa %s10, 0
    loop: start=0, step=1, limit=4
    $region2: #{tpu_custom_call.1} parent=1 // loop_pre_header
      _
    $region3: #{tpu_custom_call.1} parent=1 // loop_header
      %s13 = sphi 0, %s17
      %p14 = scmp.ge.s32.totalorder %s13, 4
      %s23 = sphi 0, %s25
      %s26 = sphi 0, %s23
      %s27 = sphi 0, %s26
      %s43 = sphi 0, %s27
      %s47 = sphi 0, %s47
      %s49 = sphi 0, %s47
      %s50 = sphi 0, %s49
      %s64 = sphi 0, %s50
      %s68 = sphi 0, %s68
      %s70 = sphi 0, %s68
      %s71 = sphi 0, %s70
      %s85 = sphi 0, %s71
      %s89 = sphi 0, %s89
      %s91 = sphi 0, %s89
      %s92 = sphi 0, %s91
      %s106 = sphi 0, %s92
      %s112 = sphi 0, %s114
      %s115 = sphi 0, %s112
      %s116 = sphi 0, %s115
      %s132 = sphi 0, %s116
    $region4: #{tpu_custom_call.1} parent=1 // loop_header_branch
      %16 = sbr.rel (%p14) target = $region8
    $region5: #{tpu_custom_call.1} parent=1 // loop_body
      %s18 = ssub.s32 %s13, 1
      %s19 = ssub.s32 %s13, 2
      %s20 = sadd.s32 %s13, 1
      %s21 = ssub.s32 %s13, %s20
      %p22 = scmp.eq.s32.totalorder %s21, 0
      %s24 = sadd.s32 %s23, 1
      %s25 = scalar_select %p22, %s23, %s24
      %p28 = pneg %p22
      %p29 = scmp.eq.s32.totalorder %s13, 1
      %p30 = por %p28, %p29
      %p31 = scmp.ne.s32.totalorder %s23, %s26
      %p32 = scmp.eq.s32.totalorder %s13, 0
      %p33 = por %p31, %p32
      %p34 = scmp.ne.s32.totalorder %s23, %s26
      %p35 = scmp.eq.s32.totalorder %s18, 1
      %p36 = por %p34, %p35
      %p37 = scmp.ne.s32.totalorder %s26, %s27
      %p38 = scmp.eq.s32.totalorder %s18, 0
      %p39 = por %p37, %p38
      %p40 = scmp.ne.s32.totalorder %s26, %s27
      %p41 = scmp.eq.s32.totalorder %s19, 1
      %p42 = por %p40, %p41
      %p44 = scmp.ne.s32.totalorder %s27, %s43
      %p45 = scmp.eq.s32.totalorder %s19, 0
      %p46 = por %p44, %p45
      %s48 = sadd.s32 %s47, 1
      %p51 = scmp.eq.s32.totalorder %s13, 1
      %p52 = scmp.ne.s32.totalorder %s47, %s49
      %p53 = scmp.eq.s32.totalorder %s13, 0
      %p54 = por %p52, %p53
      %p55 = scmp.ne.s32.totalorder %s47, %s49
      %p56 = scmp.eq.s32.totalorder %s18, 1
      %p57 = por %p55, %p56
      %p58 = scmp.ne.s32.totalorder %s49, %s50
      %p59 = scmp.eq.s32.totalorder %s18, 0
      %p60 = por %p58, %p59
      %p61 = scmp.ne.s32.totalorder %s49, %s50
      %p62 = scmp.eq.s32.totalorder %s19, 1
      %p63 = por %p61, %p62
      %p65 = scmp.ne.s32.totalorder %s50, %s64
      %p66 = scmp.eq.s32.totalorder %s19, 0
      %p67 = por %p65, %p66
      %s69 = sadd.s32 %s68, 1
      %p72 = scmp.eq.s32.totalorder %s13, 1
      %p73 = scmp.ne.s32.totalorder %s68, %s70
      %p74 = scmp.eq.s32.totalorder %s13, 0
      %p75 = por %p73, %p74
      %p76 = scmp.ne.s32.totalorder %s68, %s70
      %p77 = scmp.eq.s32.totalorder %s18, 1
      %p78 = por %p76, %p77
      %p79 = scmp.ne.s32.totalorder %s70, %s71
      %p80 = scmp.eq.s32.totalorder %s18, 0
      %p81 = por %p79, %p80
      %p82 = scmp.ne.s32.totalorder %s70, %s71
      %p83 = scmp.eq.s32.totalorder %s19, 1
      %p84 = por %p82, %p83
      %p86 = scmp.ne.s32.totalorder %s71, %s85
      %p87 = scmp.eq.s32.totalorder %s19, 0
      %p88 = por %p86, %p87
      %s90 = sadd.s32 %s89, 1
      %p93 = scmp.eq.s32.totalorder %s13, 1
      %p94 = scmp.ne.s32.totalorder %s89, %s91
      %p95 = scmp.eq.s32.totalorder %s13, 0
      %p96 = por %p94, %p95
      %p97 = scmp.ne.s32.totalorder %s89, %s91
      %p98 = scmp.eq.s32.totalorder %s18, 1
      %p99 = por %p97, %p98
      %p100 = scmp.ne.s32.totalorder %s91, %s92
      %p101 = scmp.eq.s32.totalorder %s18, 0
      %p102 = por %p100, %p101
      %p103 = scmp.ne.s32.totalorder %s91, %s92
      %p104 = scmp.eq.s32.totalorder %s19, 1
      %p105 = por %p103, %p104
      %p107 = scmp.ne.s32.totalorder %s92, %s106
      %p108 = scmp.eq.s32.totalorder %s19, 0
      %p109 = por %p107, %p108
      %s110 = ssub.s32 %s13, %s20
      %p111 = scmp.eq.s32.totalorder %s110, 0
      %s113 = sadd.s32 %s112, 1
      %s114 = scalar_select %p111, %s112, %s113
      %p117 = pneg %p111
      %p118 = scmp.eq.s32.totalorder %s13, 1
      %p119 = por %p117, %p118
      %p120 = scmp.ne.s32.totalorder %s112, %s115
      %p121 = scmp.eq.s32.totalorder %s13, 0
      %p122 = por %p120, %p121
      %p123 = scmp.ne.s32.totalorder %s112, %s115
      %p124 = scmp.eq.s32.totalorder %s18, 1
      %p125 = por %p123, %p124
      %p126 = scmp.ne.s32.totalorder %s115, %s116
      %p127 = scmp.eq.s32.totalorder %s18, 0
      %p128 = por %p126, %p127
      %p129 = scmp.ne.s32.totalorder %s115, %s116
      %p130 = scmp.eq.s32.totalorder %s19, 1
      %p131 = por %p129, %p130
      %p133 = scmp.ne.s32.totalorder %s116, %s132
      %p134 = scmp.eq.s32.totalorder %s19, 0
      %p135 = por %p133, %p134
      %p136 = scmp.le.s32.totalorder 1, %s13
      %p137 = scmp.lt.s32.totalorder %s13, 3
      %p138 = pnand %p136, %p137
      %p139 = pneg %p138
      // Predicated region
      $region9: #{tpu_custom_call.1} parent=5 // pred_check
        _
      $region10: #{tpu_custom_call.1} parent=5 // pred_check_branch
        %141 = sbr.rel (%p138) target = $region12
      $region11: #{tpu_custom_call.1} parent=5 // pred_region
        %s142 = ssub.s32 %s13, 1
        // Predicated region
        $region13: #{tpu_custom_call.1} parent=11 // pred_check
          %p143 = pneg %p60
        $region14: #{tpu_custom_call.1} parent=11 // pred_check_branch
          %145 = sbr.rel (%p143) target = $region16
        $region15: #{tpu_custom_call.1} parent=11 // pred_region
          _
        $region16: #{tpu_custom_call.1} parent=11 // pred_fallthru
          _
        // Predicated region
        $region17: #{tpu_custom_call.1} parent=11 // pred_check
          %p146 = pneg %p81
        $region18: #{tpu_custom_call.1} parent=11 // pred_check_branch
          %148 = sbr.rel (%p146) target = $region20
        $region19: #{tpu_custom_call.1} parent=11 // pred_region
          _
        $region20: #{tpu_custom_call.1} parent=11 // pred_fallthru
          _
        // Predicated region
        $region21: #{tpu_custom_call.1} parent=11 // pred_check
          %p149 = pneg %p102
        $region22: #{tpu_custom_call.1} parent=11 // pred_check_branch
          %151 = sbr.rel (%p149) target = $region24
        $region23: #{tpu_custom_call.1} parent=11 // pred_region
          _
        $region24: #{tpu_custom_call.1} parent=11 // pred_fallthru
          _
      $region12: #{tpu_custom_call.1} parent=5 // pred_fallthru
        _
      %p152 = scmp.lt.s32.totalorder %s13, 2
      // Predicated region
      $region25: #{tpu_custom_call.1} parent=5 // pred_check
        %p153 = pneg %p152
      $region26: #{tpu_custom_call.1} parent=5 // pred_check_branch
        %155 = sbr.rel (%p153) target = $region28
      $region27: #{tpu_custom_call.1} parent=5 // pred_region
        // Predicated region
        $region29: #{tpu_custom_call.1} parent=27 // pred_check
          %p156 = pneg %p33
        $region30: #{tpu_custom_call.1} parent=27 // pred_check_branch
          %158 = sbr.rel (%p156) target = $region32
        $region31: #{tpu_custom_call.1} parent=27 // pred_region
          %s159 = smul.u32 32, %s13
          %p160 = scmp.lt.s32.totalorder %s159, 63
          %s161 = scalar_select %p160, %s159, 63
          %s162 = smul.addr %s161, 4
          %s163 = scalar_lea.vmem %s0, %s162
          %s164 = smul.u32 32, %s13
        $region32: #{tpu_custom_call.1} parent=27 // pred_fallthru
          _
      $region28: #{tpu_custom_call.1} parent=5 // pred_fallthru
        _
      %p165 = scmp.le.s32.totalorder 1, %s13
      %p166 = scmp.lt.s32.totalorder %s13, 3
      %p167 = pnand %p165, %p166
      %p168 = pneg %p167
      // Predicated region
      $region33: #{tpu_custom_call.1} parent=5 // pred_check
        _
      $region34: #{tpu_custom_call.1} parent=5 // pred_check_branch
        %170 = sbr.rel (%p167) target = $region36
      $region35: #{tpu_custom_call.1} parent=5 // pred_region
        %s171 = ssub.s32 %s13, 1
        %s172 = smul.u32 32, %s18
        %p173 = scmp.lt.s32.totalorder %s172, 63
        %s174 = scalar_select %p173, %s172, 63
        %s175 = smul.addr %s174, 4
        %s176 = scalar_lea.vmem %s0, %s175
        %p177 = pneg %p39
        %p178 = pneg %p36
        %p179 = pneg %p60
        %p180 = pneg %p57
        %p181 = pneg %p81
        %p182 = pneg %p78
        %p183 = pneg %p102
        %p184 = pneg %p99
        %p185 = pneg %p128
        %p186 = pneg %p125
        %s187 = sand.u32 %s115, 1
        %s188 = scalar_lea.sflag [#allocation3], %s187
        %s189 = sand.u32 %s115, 1
        %s190 = smul.addr %s189, 128
        %s191 = scalar_lea.vmem [#allocation2], %s190
        %s192 = smul.u32 32, %s18
        %p193 = scmp.lt.s32.totalorder %s192, 63
        %s194 = scalar_select %p193, %s192, 63
        %s195 = smul.addr %s194, 4
        %s196 = scalar_lea.vmem %s0, %s195
        %s197 = smul.u32 32, %s18
        %s198 = smul.u32 32, %s18
        %v200 = vld [vmem:[%s196] sm:$0xf]
        %v201 = vld [vmem:[%s196 + $0x4] sm:$0xf]
        %v202 = vld [vmem:[%s196 + $0x8] sm:$0xf]
        %v203 = vld [vmem:[%s196 + $0xc] sm:$0xf]
        %v204 = vld [vmem:[%s196 + $0x10] sm:$0xf]
        %v205 = vld [vmem:[%s196 + $0x14] sm:$0xf]
        %v206 = vld [vmem:[%s196 + $0x18] sm:$0xf]
        %v207 = vld [vmem:[%s196 + $0x1c] sm:$0xf]
        %v208 = vld [vmem:[%s196 + $0x20] sm:$0xf]
        %v209 = vld [vmem:[%s196 + $0x24] sm:$0xf]
        %v210 = vld [vmem:[%s196 + $0x28] sm:$0xf]
        %v211 = vld [vmem:[%s196 + $0x2c] sm:$0xf]
        %v212 = vld [vmem:[%s196 + $0x30] sm:$0xf]
        %v213 = vld [vmem:[%s196 + $0x34] sm:$0xf]
        %v214 = vld [vmem:[%s196 + $0x38] sm:$0xf]
        %v215 = vld [vmem:[%s196 + $0x3c] sm:$0xf]
        %v216 = vld [vmem:[%s196 + $0x40] sm:$0xf]
        %v217 = vld [vmem:[%s196 + $0x44] sm:$0xf]
        %v218 = vld [vmem:[%s196 + $0x48] sm:$0xf]
        %v219 = vld [vmem:[%s196 + $0x4c] sm:$0xf]
        %v220 = vld [vmem:[%s196 + $0x50] sm:$0xf]
        %v221 = vld [vmem:[%s196 + $0x54] sm:$0xf]
        %v222 = vld [vmem:[%s196 + $0x58] sm:$0xf]
        %v223 = vld [vmem:[%s196 + $0x5c] sm:$0xf]
        %v224 = vld [vmem:[%s196 + $0x60] sm:$0xf]
        %v225 = vld [vmem:[%s196 + $0x64] sm:$0xf]
        %v226 = vld [vmem:[%s196 + $0x68] sm:$0xf]
        %v227 = vld [vmem:[%s196 + $0x6c] sm:$0xf]
        %v228 = vld [vmem:[%s196 + $0x70] sm:$0xf]
        %v229 = vld [vmem:[%s196 + $0x74] sm:$0xf]
        %v230 = vld [vmem:[%s196 + $0x78] sm:$0xf]
        %v231 = vld [vmem:[%s196 + $0x7c] sm:$0xf]
        %v232 = vld [vmem:[%s1] sm:$0xf]
        %v233 = vld [vmem:[%s1 + $0x4] sm:$0xf]
        %v234 = vld [vmem:[%s1 + $0x8] sm:$0xf]
        %v235 = vld [vmem:[%s1 + $0xc] sm:$0x3]
        %v268 = vunpack.c.l.b16 %v200
        %v269 = vunpack.c.l.b16 %v201
        %v270 = vunpack.c.l.b16 %v202
        %v271 = vunpack.c.l.b16 %v203
        %v272 = vunpack.c.l.b16 %v204
        %v273 = vunpack.c.l.b16 %v205
        %v274 = vunpack.c.l.b16 %v206
        %v275 = vunpack.c.l.b16 %v207
        %v276 = vunpack.c.l.b16 %v208
        %v277 = vunpack.c.l.b16 %v209
        %v278 = vunpack.c.l.b16 %v210
        %v279 = vunpack.c.l.b16 %v211
        %v280 = vunpack.c.l.b16 %v212
        %v281 = vunpack.c.l.b16 %v213
        %v282 = vunpack.c.l.b16 %v214
        %v283 = vunpack.c.l.b16 %v215
        %v284 = vunpack.c.l.b16 %v216
        %v285 = vunpack.c.l.b16 %v217
        %v286 = vunpack.c.l.b16 %v218
        %v287 = vunpack.c.l.b16 %v219
        %v288 = vunpack.c.l.b16 %v220
        %v289 = vunpack.c.l.b16 %v221
        %v290 = vunpack.c.l.b16 %v222
        %v291 = vunpack.c.l.b16 %v223
        %v292 = vunpack.c.l.b16 %v224
        %v293 = vunpack.c.l.b16 %v225
        %v294 = vunpack.c.l.b16 %v226
        %v295 = vunpack.c.l.b16 %v227
        %v296 = vunpack.c.l.b16 %v228
        %v297 = vunpack.c.l.b16 %v229
        %v298 = vunpack.c.l.b16 %v230
        %v299 = vunpack.c.l.b16 %v231
        %v300 = vpack.c.b16 %v269, %v268
        %v301 = vpack.c.b16 %v271, %v270
        %v302 = vpack.c.b16 %v273, %v272
        %v303 = vpack.c.b16 %v275, %v274
        %v304 = vpack.c.b16 %v277, %v276
        %v305 = vpack.c.b16 %v279, %v278
        %v306 = vpack.c.b16 %v281, %v280
        %v307 = vpack.c.b16 %v283, %v282
        %v308 = vpack.c.b16 %v285, %v284
        %v309 = vpack.c.b16 %v287, %v286
        %v310 = vpack.c.b16 %v289, %v288
        %v311 = vpack.c.b16 %v291, %v290
        %v312 = vpack.c.b16 %v293, %v292
        %v313 = vpack.c.b16 %v295, %v294
        %v314 = vpack.c.b16 %v297, %v296
        %v315 = vpack.c.b16 %v299, %v298
        %v320 = vunpack.c.l.b16 %v232
        %v321 = vunpack.c.l.b16 %v233
        %v322 = vunpack.c.l.b16 %v234
        %v323 = vunpack.c.l.b16 %v235
        %v324 = vpack.c.b16 %v321, %v320
        %v325 = vpack.c.b16 %v323, %v322
        %vm327 = vcmask 220160
        %v329 = vsel %vm327, %v300, 0
        %v332 = vsel %vm327, %v301, 0
        %v335 = vsel %vm327, %v302, 0
        %v338 = vsel %vm327, %v303, 0
        %v341 = vsel %vm327, %v304, 0
        %v344 = vsel %vm327, %v305, 0
        %v347 = vsel %vm327, %v306, 0
        %v350 = vsel %vm327, %v307, 0
        %v353 = vsel %vm327, %v308, 0
        %v356 = vsel %vm327, %v309, 0
        %v359 = vsel %vm327, %v310, 0
        %v362 = vsel %vm327, %v311, 0
        %v365 = vsel %vm327, %v312, 0
        %v368 = vsel %vm327, %v313, 0
        %v371 = vsel %vm327, %v314, 0
        %v374 = vsel %vm327, %v315, 0
        %vm376 = vcmask 1044480
        %vm377 = vcmask 1045504
        %v378 = vsel %vm376, 4294967295, 65535
        %v379 = vsel %vm377, %v378, 0
        %v381 = vand.u32 %v325, %v379
        %383 = vmatprep.subr.bf16.mxu0 0
        %384 = vmatpush1.bf16.msra.mxu0 %v324
        %385 = vmatprep.subr.bf16.mxu0 0
        %386 = vmatpush1.bf16.msra.mxu0 %v381
        %387 = vmatprep.subr.bf16.mxu0 0
        %388 = vmatpush1.bf16.msra.mxu0 0
        %389 = vmatprep.subr.bf16.mxu0 0
        %390 = vmatpush1.bf16.msra.mxu0 0
        %391 = vmatprep.subr.bf16.mxu0 0
        %392 = vmatpush1.bf16.msra.mxu0 0
        %393 = vmatprep.subr.bf16.mxu0 0
        %394 = vmatpush1.bf16.msra.mxu0 0
        %395 = vmatprep.subr.bf16.mxu0 0
        %396 = vmatpush1.bf16.msra.mxu0 0
        %397 = vmatprep.subr.bf16.mxu0 0
        %398 = vmatpush1.bf16.msra.mxu0 0
        %399 = vmatprep.subr.bf16.mxu0 0
        %400 = vmatpush1.bf16.msra.mxu0 0
        %401 = vmatprep.subr.bf16.mxu0 0
        %402 = vmatpush1.bf16.msra.mxu0 0
        %403 = vmatprep.subr.bf16.mxu0 0
        %404 = vmatpush1.bf16.msra.mxu0 0
        %405 = vmatprep.subr.bf16.mxu0 0
        %406 = vmatpush1.bf16.msra.mxu0 0
        %407 = vmatprep.subr.bf16.mxu0 0
        %408 = vmatpush1.bf16.msra.mxu0 0
        %409 = vmatprep.subr.bf16.mxu0 0
        %410 = vmatpush1.bf16.msra.mxu0 0
        %411 = vmatprep.subr.bf16.mxu0 0
        %412 = vmatpush1.bf16.msra.mxu0 0
        %413 = vmatprep.subr.bf16.mxu0 0
        %414 = vmatpush1.bf16.msra.mxu0 0
        %415 = vmatprep.mubr.bf16.mxu0 0
        %416 = vmatmul.mubr.bf16.gmra.mrb[0].mxu0 %v329
        %v417 = vpop.f32.mrb[0].mxu0
        %v418 = vadd.f32 0.0, %v417
        %v419 = vpop.f32.mrb[0].mxu0
        %v420 = vpop.f32.mrb[0].mxu0
        %v421 = vadd.f32 0.0, %v420
        %v422 = vpop.f32.mrb[0].mxu0
        %423 = vmatprep.mubr.bf16.mxu0 0
        %424 = vmatmul.mubr.bf16.gmra.mrb[0].mxu0 %v332
        %v425 = vpop.f32.mrb[0].mxu0
        %v426 = vadd.f32 0.0, %v425
        %v427 = vpop.f32.mrb[0].mxu0
        %v428 = vpop.f32.mrb[0].mxu0
        %v429 = vadd.f32 0.0, %v428
        %v430 = vpop.f32.mrb[0].mxu0
        %431 = vmatprep.mubr.bf16.mxu0 0
        %432 = vmatmul.mubr.bf16.gmra.mrb[0].mxu0 %v335
        %v433 = vpop.f32.mrb[0].mxu0
        %v434 = vadd.f32 0.0, %v433
        %v435 = vpop.f32.mrb[0].mxu0
        %v436 = vpop.f32.mrb[0].mxu0
        %v437 = vadd.f32 0.0, %v436
        %v438 = vpop.f32.mrb[0].mxu0
        %439 = vmatprep.mubr.bf16.mxu0 0
        %440 = vmatmul.mubr.bf16.gmra.mrb[0].mxu0 %v338
        %v441 = vpop.f32.mrb[0].mxu0
        %v442 = vadd.f32 0.0, %v441
        %v443 = vpop.f32.mrb[0].mxu0
        %v444 = vpop.f32.mrb[0].mxu0
        %v445 = vadd.f32 0.0, %v444
        %v446 = vpop.f32.mrb[0].mxu0
        %447 = vmatprep.mubr.bf16.mxu0 0
        %448 = vmatmul.mubr.bf16.gmra.mrb[0].mxu0 %v341
        %v449 = vpop.f32.mrb[0].mxu0
        %v450 = vadd.f32 0.0, %v449
        %v451 = vpop.f32.mrb[0].mxu0
        %v452 = vpop.f32.mrb[0].mxu0
        %v453 = vadd.f32 0.0, %v452
        %v454 = vpop.f32.mrb[0].mxu0
        %455 = vmatprep.mubr.bf16.mxu0 0
        %456 = vmatmul.mubr.bf16.gmra.mrb[0].mxu0 %v344
        %v457 = vpop.f32.mrb[0].mxu0
        %v458 = vadd.f32 0.0, %v457
        %v459 = vpop.f32.mrb[0].mxu0
        %v460 = vpop.f32.mrb[0].mxu0
        %v461 = vadd.f32 0.0, %v460
        %v462 = vpop.f32.mrb[0].mxu0
        %463 = vmatprep.mubr.bf16.mxu0 0
        %464 = vmatmul.mubr.bf16.gmra.mrb[0].mxu0 %v347
        %v465 = vpop.f32.mrb[0].mxu0
        %v466 = vadd.f32 0.0, %v465
        %v467 = vpop.f32.mrb[0].mxu0
        %v468 = vpop.f32.mrb[0].mxu0
        %v469 = vadd.f32 0.0, %v468
        %v470 = vpop.f32.mrb[0].mxu0
        %471 = vmatprep.mubr.bf16.mxu0 0
        %472 = vmatmul.mubr.bf16.gmra.mrb[0].mxu0 %v350
        %v473 = vpop.f32.mrb[0].mxu0
        %v474 = vadd.f32 0.0, %v473
        %v475 = vpop.f32.mrb[0].mxu0
        %v476 = vpop.f32.mrb[0].mxu0
        %v477 = vadd.f32 0.0, %v476
        %v478 = vpop.f32.mrb[0].mxu0
        %479 = vmatprep.mubr.bf16.mxu0 0
        %480 = vmatmul.mubr.bf16.gmra.mrb[0].mxu0 %v353
        %v481 = vpop.f32.mrb[0].mxu0
        %v482 = vadd.f32 0.0, %v481
        %v483 = vpop.f32.mrb[0].mxu0
        %v484 = vpop.f32.mrb[0].mxu0
        %v485 = vadd.f32 0.0, %v484
        %v486 = vpop.f32.mrb[0].mxu0
        %487 = vmatprep.mubr.bf16.mxu0 0
        %488 = vmatmul.mubr.bf16.gmra.mrb[0].mxu0 %v356
        %v489 = vpop.f32.mrb[0].mxu0
        %v490 = vadd.f32 0.0, %v489
        %v491 = vpop.f32.mrb[0].mxu0
        %v492 = vpop.f32.mrb[0].mxu0
        %v493 = vadd.f32 0.0, %v492
        %v494 = vpop.f32.mrb[0].mxu0
        %495 = vmatprep.mubr.bf16.mxu0 0
        %496 = vmatmul.mubr.bf16.gmra.mrb[0].mxu0 %v359
        %v497 = vpop.f32.mrb[0].mxu0
        %v498 = vadd.f32 0.0, %v497
        %v499 = vpop.f32.mrb[0].mxu0
        %v500 = vpop.f32.mrb[0].mxu0
        %v501 = vadd.f32 0.0, %v500
        %v502 = vpop.f32.mrb[0].mxu0
        %503 = vmatprep.mubr.bf16.mxu0 0
        %504 = vmatmul.mubr.bf16.gmra.mrb[0].mxu0 %v362
        %v505 = vpop.f32.mrb[0].mxu0
        %v506 = vadd.f32 0.0, %v505
        %v507 = vpop.f32.mrb[0].mxu0
        %v508 = vpop.f32.mrb[0].mxu0
        %v509 = vadd.f32 0.0, %v508
        %v510 = vpop.f32.mrb[0].mxu0
        %511 = vmatprep.mubr.bf16.mxu0 0
        %512 = vmatmul.mubr.bf16.gmra.mrb[0].mxu0 %v365
        %v513 = vpop.f32.mrb[0].mxu0
        %v514 = vadd.f32 0.0, %v513
        %v515 = vpop.f32.mrb[0].mxu0
        %v516 = vpop.f32.mrb[0].mxu0
        %v517 = vadd.f32 0.0, %v516
        %v518 = vpop.f32.mrb[0].mxu0
        %519 = vmatprep.mubr.bf16.mxu0 0
        %520 = vmatmul.mubr.bf16.gmra.mrb[0].mxu0 %v368
        %v521 = vpop.f32.mrb[0].mxu0
        %v522 = vadd.f32 0.0, %v521
        %v523 = vpop.f32.mrb[0].mxu0
        %v524 = vpop.f32.mrb[0].mxu0
        %v525 = vadd.f32 0.0, %v524
        %v526 = vpop.f32.mrb[0].mxu0
        %527 = vmatprep.mubr.bf16.mxu0 0
        %528 = vmatmul.mubr.bf16.gmra.mrb[0].mxu0 %v371
        %v529 = vpop.f32.mrb[0].mxu0
        %v530 = vadd.f32 0.0, %v529
        %v531 = vpop.f32.mrb[0].mxu0
        %v532 = vpop.f32.mrb[0].mxu0
        %v533 = vadd.f32 0.0, %v532
        %v534 = vpop.f32.mrb[0].mxu0
        %535 = vmatprep.mubr.bf16.mxu0 0
        %536 = vmatmul.mubr.bf16.gmra.mrb[0].mxu0 %v374
        %v537 = vpop.f32.mrb[0].mxu0
        %v538 = vadd.f32 0.0, %v537
        %v539 = vpop.f32.mrb[0].mxu0
        %v540 = vpop.f32.mrb[0].mxu0
        %v541 = vadd.f32 0.0, %v540
        %v542 = vpop.f32.mrb[0].mxu0
        %543 = vdwg.mxu0
        %v544 = vld [vmem:[%s2] sm:$0x1]
        %v546 = vlaneseq
        %v547 = vshrl.u32 %v546, 7
        %v548 = vsub.s32 0, %v547
        %v549 = vrot.slane %v544, %v548
        %v551 = vmul.f32 %v418, %v549
        %v552 = vmul.f32 %v421, %v549
        %v553 = vmul.f32 %v426, %v549
        %v554 = vmul.f32 %v429, %v549
        %v555 = vmul.f32 %v434, %v549
        %v556 = vmul.f32 %v437, %v549
        %v557 = vmul.f32 %v442, %v549
        %v558 = vmul.f32 %v445, %v549
        %v559 = vmul.f32 %v450, %v549
        %v560 = vmul.f32 %v453, %v549
        %v561 = vmul.f32 %v458, %v549
        %v562 = vmul.f32 %v461, %v549
        %v563 = vmul.f32 %v466, %v549
        %v564 = vmul.f32 %v469, %v549
        %v565 = vmul.f32 %v474, %v549
        %v566 = vmul.f32 %v477, %v549
        %v567 = vmul.f32 %v482, %v549
        %v568 = vmul.f32 %v485, %v549
        %v569 = vmul.f32 %v490, %v549
        %v570 = vmul.f32 %v493, %v549
        %v571 = vmul.f32 %v498, %v549
        %v572 = vmul.f32 %v501, %v549
        %v573 = vmul.f32 %v506, %v549
        %v574 = vmul.f32 %v509, %v549
        %v575 = vmul.f32 %v514, %v549
        %v576 = vmul.f32 %v517, %v549
        %v577 = vmul.f32 %v522, %v549
        %v578 = vmul.f32 %v525, %v549
        %v579 = vmul.f32 %v530, %v549
        %v580 = vmul.f32 %v533, %v549
        %v581 = vmul.f32 %v538, %v549
        %v582 = vmul.f32 %v541, %v549
        %v583 = vld [vmem:[%s3] sm:$0x1]
        %v585 = vlaneseq
        %v586 = vshrl.u32 %v585, 7
        %v587 = vsub.s32 0, %v586
        %v588 = vrot.slane %v583, %v587
        %v590 = vadd.f32 %v551, %v588
        %v591 = vadd.f32 %v552, %v588
        %v592 = vadd.f32 %v553, %v588
        %v593 = vadd.f32 %v554, %v588
        %v594 = vadd.f32 %v555, %v588
        %v595 = vadd.f32 %v556, %v588
        %v596 = vadd.f32 %v557, %v588
        %v597 = vadd.f32 %v558, %v588
        %v598 = vadd.f32 %v559, %v588
        %v599 = vadd.f32 %v560, %v588
        %v600 = vadd.f32 %v561, %v588
        %v601 = vadd.f32 %v562, %v588
        %v602 = vadd.f32 %v563, %v588
        %v603 = vadd.f32 %v564, %v588
        %v604 = vadd.f32 %v565, %v588
        %v605 = vadd.f32 %v566, %v588
        %v606 = vadd.f32 %v567, %v588
        %v607 = vadd.f32 %v568, %v588
        %v608 = vadd.f32 %v569, %v588
        %v609 = vadd.f32 %v570, %v588
        %v610 = vadd.f32 %v571, %v588
        %v611 = vadd.f32 %v572, %v588
        %v612 = vadd.f32 %v573, %v588
        %v613 = vadd.f32 %v574, %v588
        %v614 = vadd.f32 %v575, %v588
        %v615 = vadd.f32 %v576, %v588
        %v616 = vadd.f32 %v577, %v588
        %v617 = vadd.f32 %v578, %v588
        %v618 = vadd.f32 %v579, %v588
        %v619 = vadd.f32 %v580, %v588
        %v620 = vadd.f32 %v581, %v588
        %v621 = vadd.f32 %v582, %v588
        %v622 = vmax.f32 %v590, 0.0
        %v623 = vmax.f32 %v591, 0.0
        %v624 = vmax.f32 %v592, 0.0
        %v625 = vmax.f32 %v593, 0.0
        %v626 = vmax.f32 %v594, 0.0
        %v627 = vmax.f32 %v595, 0.0
        %v628 = vmax.f32 %v596, 0.0
        %v629 = vmax.f32 %v597, 0.0
        %v630 = vmax.f32 %v598, 0.0
        %v631 = vmax.f32 %v599, 0.0
        %v632 = vmax.f32 %v600, 0.0
        %v633 = vmax.f32 %v601, 0.0
        %v634 = vmax.f32 %v602, 0.0
        %v635 = vmax.f32 %v603, 0.0
        %v636 = vmax.f32 %v604, 0.0
        %v637 = vmax.f32 %v605, 0.0
        %v638 = vmax.f32 %v606, 0.0
        %v639 = vmax.f32 %v607, 0.0
        %v640 = vmax.f32 %v608, 0.0
        %v641 = vmax.f32 %v609, 0.0
        %v642 = vmax.f32 %v610, 0.0
        %v643 = vmax.f32 %v611, 0.0
        %v644 = vmax.f32 %v612, 0.0
        %v645 = vmax.f32 %v613, 0.0
        %v646 = vmax.f32 %v614, 0.0
        %v647 = vmax.f32 %v615, 0.0
        %v648 = vmax.f32 %v616, 0.0
        %v649 = vmax.f32 %v617, 0.0
        %v650 = vmax.f32 %v618, 0.0
        %v651 = vmax.f32 %v619, 0.0
        %v652 = vmax.f32 %v620, 0.0
        %v653 = vmax.f32 %v621, 0.0
        %v654 = vpack.c.bf16 %v623, %v622
        %v655 = vpack.c.bf16 %v625, %v624
        %v656 = vpack.c.bf16 %v627, %v626
        %v657 = vpack.c.bf16 %v629, %v628
        %v658 = vpack.c.bf16 %v631, %v630
        %v659 = vpack.c.bf16 %v633, %v632
        %v660 = vpack.c.bf16 %v635, %v634
        %v661 = vpack.c.bf16 %v637, %v636
        %v662 = vpack.c.bf16 %v639, %v638
        %v663 = vpack.c.bf16 %v641, %v640
        %v664 = vpack.c.bf16 %v643, %v642
        %v665 = vpack.c.bf16 %v645, %v644
        %v666 = vpack.c.bf16 %v647, %v646
        %v667 = vpack.c.bf16 %v649, %v648
        %v668 = vpack.c.bf16 %v651, %v650
        %v669 = vpack.c.bf16 %v653, %v652
        %v686 = vunpack.c.l.b16 %v654
        %v687 = vunpack.c.h.b16 %v654
        %v688 = vunpack.c.l.b16 %v655
        %v689 = vunpack.c.h.b16 %v655
        %v690 = vunpack.c.l.b16 %v656
        %v691 = vunpack.c.h.b16 %v656
        %v692 = vunpack.c.l.b16 %v657
        %v693 = vunpack.c.h.b16 %v657
        %v694 = vunpack.c.l.b16 %v658
        %v695 = vunpack.c.h.b16 %v658
        %v696 = vunpack.c.l.b16 %v659
        %v697 = vunpack.c.h.b16 %v659
        %v698 = vunpack.c.l.b16 %v660
        %v699 = vunpack.c.h.b16 %v660
        %v700 = vunpack.c.l.b16 %v661
        %v701 = vunpack.c.h.b16 %v661
        %v702 = vunpack.c.l.b16 %v662
        %v703 = vunpack.c.h.b16 %v662
        %v704 = vunpack.c.l.b16 %v663
        %v705 = vunpack.c.h.b16 %v663
        %v706 = vunpack.c.l.b16 %v664
        %v707 = vunpack.c.h.b16 %v664
        %v708 = vunpack.c.l.b16 %v665
        %v709 = vunpack.c.h.b16 %v665
        %v710 = vunpack.c.l.b16 %v666
        %v711 = vunpack.c.h.b16 %v666
        %v712 = vunpack.c.l.b16 %v667
        %v713 = vunpack.c.h.b16 %v667
        %v714 = vunpack.c.l.b16 %v668
        %v715 = vunpack.c.h.b16 %v668
        %v716 = vunpack.c.l.b16 %v669
        %v717 = vunpack.c.h.b16 %v669
        %v718 = vpack.c.b16 %v686, %v686
        %v719 = vpack.c.b16 %v687, %v687
        %v720 = vpack.c.b16 %v688, %v688
        %v721 = vpack.c.b16 %v689, %v689
        %v722 = vpack.c.b16 %v690, %v690
        %v723 = vpack.c.b16 %v691, %v691
        %v724 = vpack.c.b16 %v692, %v692
        %v725 = vpack.c.b16 %v693, %v693
        %v726 = vpack.c.b16 %v694, %v694
        %v727 = vpack.c.b16 %v695, %v695
        %v728 = vpack.c.b16 %v696, %v696
        %v729 = vpack.c.b16 %v697, %v697
        %v730 = vpack.c.b16 %v698, %v698
        %v731 = vpack.c.b16 %v699, %v699
        %v732 = vpack.c.b16 %v700, %v700
        %v733 = vpack.c.b16 %v701, %v701
        %v734 = vpack.c.b16 %v702, %v702
        %v735 = vpack.c.b16 %v703, %v703
        %v736 = vpack.c.b16 %v704, %v704
        %v737 = vpack.c.b16 %v705, %v705
        %v738 = vpack.c.b16 %v706, %v706
        %v739 = vpack.c.b16 %v707, %v707
        %v740 = vpack.c.b16 %v708, %v708
        %v741 = vpack.c.b16 %v709, %v709
        %v742 = vpack.c.b16 %v710, %v710
        %v743 = vpack.c.b16 %v711, %v711
        %v744 = vpack.c.b16 %v712, %v712
        %v745 = vpack.c.b16 %v713, %v713
        %v746 = vpack.c.b16 %v714, %v714
        %v747 = vpack.c.b16 %v715, %v715
        %v748 = vpack.c.b16 %v716, %v716
        %v749 = vpack.c.b16 %v717, %v717
        %782 = vst [vmem:[%s191] sm:$0xf] %v718
        %783 = vst [vmem:[%s191 + $0x4] sm:$0xf] %v719
        %784 = vst [vmem:[%s191 + $0x8] sm:$0xf] %v720
        %785 = vst [vmem:[%s191 + $0xc] sm:$0xf] %v721
        %786 = vst [vmem:[%s191 + $0x10] sm:$0xf] %v722
        %787 = vst [vmem:[%s191 + $0x14] sm:$0xf] %v723
        %788 = vst [vmem:[%s191 + $0x18] sm:$0xf] %v724
        %789 = vst [vmem:[%s191 + $0x1c] sm:$0xf] %v725
        %790 = vst [vmem:[%s191 + $0x20] sm:$0xf] %v726
        %791 = vst [vmem:[%s191 + $0x24] sm:$0xf] %v727
        %792 = vst [vmem:[%s191 + $0x28] sm:$0xf] %v728
        %793 = vst [vmem:[%s191 + $0x2c] sm:$0xf] %v729
        %794 = vst [vmem:[%s191 + $0x30] sm:$0xf] %v730
        %795 = vst [vmem:[%s191 + $0x34] sm:$0xf] %v731
        %796 = vst [vmem:[%s191 + $0x38] sm:$0xf] %v732
        %797 = vst [vmem:[%s191 + $0x3c] sm:$0xf] %v733
        %798 = vst [vmem:[%s191 + $0x40] sm:$0xf] %v734
        %799 = vst [vmem:[%s191 + $0x44] sm:$0xf] %v735
        %800 = vst [vmem:[%s191 + $0x48] sm:$0xf] %v736
        %801 = vst [vmem:[%s191 + $0x4c] sm:$0xf] %v737
        %802 = vst [vmem:[%s191 + $0x50] sm:$0xf] %v738
        %803 = vst [vmem:[%s191 + $0x54] sm:$0xf] %v739
        %804 = vst [vmem:[%s191 + $0x58] sm:$0xf] %v740
        %805 = vst [vmem:[%s191 + $0x5c] sm:$0xf] %v741
        %806 = vst [vmem:[%s191 + $0x60] sm:$0xf] %v742
        %807 = vst [vmem:[%s191 + $0x64] sm:$0xf] %v743
        %808 = vst [vmem:[%s191 + $0x68] sm:$0xf] %v744
        %809 = vst [vmem:[%s191 + $0x6c] sm:$0xf] %v745
        %810 = vst [vmem:[%s191 + $0x70] sm:$0xf] %v746
        %811 = vst [vmem:[%s191 + $0x74] sm:$0xf] %v747
        %812 = vst [vmem:[%s191 + $0x78] sm:$0xf] %v748
        %813 = vst [vmem:[%s191 + $0x7c] sm:$0xf] %v749
        %s814 = sand.u32 %s115, 1
        %s815 = scalar_lea.sflag [#allocation3], %s814
        %s816 = sand.u32 %s115, 1
        %s817 = smul.addr %s816, 128
        %s818 = scalar_lea.vmem [#allocation2], %s817
        // Predicated region
        $region37: #{tpu_custom_call.1} parent=35 // pred_check
          %p819 = pneg %p125
        $region38: #{tpu_custom_call.1} parent=35 // pred_check_branch
          %821 = sbr.rel (%p819) target = $region40
        $region39: #{tpu_custom_call.1} parent=35 // pred_region
          %s822 = smul.u32 32, %s18
          %s824 = ssub.s32 2048, 2048
          %825 = vsyncadd %s815, %s824
          %s826 = smul.addr %s822, 64
          %s827 = scalar_lea.hbm %s4, %s826
          %s828 = sshll.u32 %s818, 4
          %s829 = int_to_ptr.vmem [resolvable:$true] %s828
          %834 = dma.vmem_to_hbm [thread:$0]  %s829, 2048, %s827, %s815, 64, 64, 4
        $region40: #{tpu_custom_call.1} parent=35 // pred_fallthru
          _
      $region36: #{tpu_custom_call.1} parent=5 // pred_fallthru
        _
      %p835 = scmp.le.s32.totalorder 2, %s13
      // Predicated region
      $region41: #{tpu_custom_call.1} parent=5 // pred_check
        %p836 = pneg %p835
      $region42: #{tpu_custom_call.1} parent=5 // pred_check_branch
        %838 = sbr.rel (%p836) target = $region44
      $region43: #{tpu_custom_call.1} parent=5 // pred_region
        %s839 = ssub.s32 %s13, 2
        // Predicated region
        $region45: #{tpu_custom_call.1} parent=43 // pred_check
          %p840 = pneg %p131
        $region46: #{tpu_custom_call.1} parent=43 // pred_check_branch
          %842 = sbr.rel (%p840) target = $region48
        $region47: #{tpu_custom_call.1} parent=43 // pred_region
          %s843 = sand.u32 %s116, 1
          %s844 = scalar_lea.sflag [#allocation3], %s843
          %s845 = sand.u32 %s116, 1
          %s846 = smul.addr %s845, 128
          %s847 = scalar_lea.vmem [#allocation2], %s846
          %848 = dma.done %s844, 2048
        $region48: #{tpu_custom_call.1} parent=43 // pred_fallthru
          _
      $region44: #{tpu_custom_call.1} parent=5 // pred_fallthru
        _
    $region6: #{tpu_custom_call.1} parent=1 // loop_footer
      %s17 = sadd.s32 1, %s13
    $region7: #{tpu_custom_call.1} parent=1 // loop_footer_branch
      %12 = sbr.rel target = $region3
    $region8: #{tpu_custom_call.1} parent=1 // loop_exit
      _
    %849 = vsyncpa [#allocation3], 1
    %s850 = scalar_lea.sflag [#allocation3], 1
    %851 = vsyncpa %s850, 1

</llo_original>
